<compile_context>
chip_gen: v7x
topology: tpu7x:2x2x1
jax: 0.10.0
libtpu: 0.0.40
codegen_flags: <defaults>
</compile_context>

<pallas_src>
import jax
import jax.numpy as jnp
from jax.experimental import pallas as pl
from jax.experimental.pallas import tpu as pltpu

SEQ_LENGTH = 1
INPUT_SIZE = 1
NUM_FILTERS = 32
FILTER_SIZE = 1
OUTPUT_SIZE = 1

# The algebraic fold below is only valid under these conditions.
assert INPUT_SIZE * FILTER_SIZE == 1
assert SEQ_LENGTH - FILTER_SIZE + 1 == 1
assert OUTPUT_SIZE == 1

_LANE = 128              # vreg lane width
_ROWS_PER_BLOCK = 1024   # 1024 x 128 x 4 B = 512 KiB per f32 block


def cnn_kernel(wb_ref, x_ref, o_ref):
    # wb_ref: (2,) SMEM — [w_eff, b_eff] folded conv+fc scalars.
    # x_ref : (TR, 128) VMEM — batch laid out dense over sublanes x lanes.
    # o_ref : (TR, 128) VMEM.
    o_ref[...] = x_ref[...] * wb_ref[0] + wb_ref[1]


def cnn_forward(x, conv_w, conv_b, fc_w, fc_b):
    """x: (B, seq_length, input_size) float32; mirrors the PyTorch forward."""
    B = x.shape[0]

    # --- fold the two linear layers into a single scalar multiply-add ------
    # conv_out = x @ wc + bc   (wc: (in_ch*k, num_filters) = (1, 32))
    # out      = conv_out @ wf + bf   (wf: (num_filters, 1))
    # => out = x * (wc @ wf) + (bc @ wf + bf)
    wc = conv_w.reshape(NUM_FILTERS, INPUT_SIZE * FILTER_SIZE).T      # (1, 32)
    wf = fc_w.reshape(OUTPUT_SIZE, NUM_FILTERS).T                     # (32, 1)
    w_eff = (wc @ wf).reshape(())                                     # scalar
    b_eff = (conv_b.reshape(1, NUM_FILTERS) @ wf).reshape(()) + fc_b.reshape(())
    wb = jnp.stack([w_eff, b_eff]).astype(jnp.float32)                # (2,)

    # --- dense (rows, 128) layout -----------------------------------------
    x_flat = x.reshape(B).astype(jnp.float32)
    if B % _LANE != 0:
        # Ragged batch: pad to a lane multiple (only extra HBM traffic path).
        b_pad = pl.cdiv(B, _LANE) * _LANE
        x_flat = jnp.pad(x_flat, (0, b_pad - B))
    else:
        # Metadata-only reshape, no extra HBM pass.
        b_pad = B
    rows = b_pad // _LANE
    x2d = x_flat.reshape(rows, _LANE)

    # Block selection:
    #   small inputs  -> one grid step covering the full array (block == array
    #                    dims, valid regardless of rows % 8);
    #   large inputs  -> 512 KiB blocks (rows multiple of 8), Pallas masks the
    #                    partial last block, grid axis parallel across TCs.
    if rows <= _ROWS_PER_BLOCK:
        tr = rows
    else:
        tr = _ROWS_PER_BLOCK
    grid = (pl.cdiv(rows, tr),)

    out2d = pl.pallas_call(
        cnn_kernel,
        out_shape=jax.ShapeDtypeStruct((rows, _LANE), jnp.float32),
        grid=grid,
        in_specs=[
            pl.BlockSpec(memory_space=pltpu.SMEM),            # folded scalars
            pl.BlockSpec((tr, _LANE), lambda i: (i, 0)),      # x block
        ],
        out_specs=pl.BlockSpec((tr, _LANE), lambda i: (i, 0)),
        compiler_params=pltpu.CompilerParams(
            dimension_semantics=("parallel",)),
    )(wb, x2d)

    out_flat = out2d.reshape(b_pad)
    if b_pad != B:
        out_flat = out_flat[:B]   # drop padded tail (which holds b_eff)
    return out_flat.reshape(B, OUTPUT_SIZE)


def _init_params(key):
    # Deterministic init roughly following PyTorch's uniform(-1/sqrt(fan_in), ...)
    k1, k2, k3, k4 = jax.random.split(key, 4)
    conv_fan_in = INPUT_SIZE * FILTER_SIZE
    conv_bound = 1.0 / (conv_fan_in ** 0.5)
    fc_fan_in = NUM_FILTERS * (SEQ_LENGTH - FILTER_SIZE + 1)
    fc_bound = 1.0 / (fc_fan_in ** 0.5)

    conv_w = jax.random.uniform(k1, (NUM_FILTERS, INPUT_SIZE, FILTER_SIZE),
                                jnp.float32, -conv_bound, conv_bound)
    conv_b = jax.random.uniform(k2, (NUM_FILTERS,), jnp.float32,
                                -conv_bound, conv_bound)
    fc_w = jax.random.uniform(k3, (OUTPUT_SIZE, fc_fan_in), jnp.float32,
                              -fc_bound, fc_bound)
    fc_b = jax.random.uniform(k4, (OUTPUT_SIZE,), jnp.float32,
                              -fc_bound, fc_bound)
    return conv_w, conv_b, fc_w, fc_b


def _reference(x, conv_w, conv_b, fc_w, fc_b):
    # Pure-JAX reference (same math as the PyTorch forward).
    x_ncl = jnp.transpose(x, (0, 2, 1))                        # (B, C_in, L)
    conv_ref = jnp.einsum('bcl,fck->bfl', x_ncl, conv_w) + conv_b[None, :, None]
    flat_ref = conv_ref.reshape(x.shape[0], -1)
    return flat_ref @ fc_w.T + fc_b


if __name__ == "__main__":
    key = jax.random.PRNGKey(0)
    k_params, k_x1, k_x2 = jax.random.split(key, 3)
    conv_w, conv_b, fc_w, fc_b = _init_params(k_params)

    # Case 1: tiny ragged batch (B=8) — single grid step, padded lane tail.
    B1 = 8
    x1 = jax.random.normal(k_x1, (B1, SEQ_LENGTH, INPUT_SIZE), jnp.float32)
    out1 = jax.block_until_ready(cnn_forward(x1, conv_w, conv_b, fc_w, fc_b))
    ref1 = _reference(x1, conv_w, conv_b, fc_w, fc_b)
    assert out1.shape == (B1, OUTPUT_SIZE)
    assert jnp.allclose(out1, ref1, atol=1e-5, rtol=1e-5)

    # Case 2: lane-multiple batch (B=384) — metadata-only relayout, no pad/slice.
    B2 = 384
    x2 = jax.random.normal(k_x2, (B2, SEQ_LENGTH, INPUT_SIZE), jnp.float32)
    out2 = jax.block_until_ready(cnn_forward(x2, conv_w, conv_b, fc_w, fc_b))
    ref2 = _reference(x2, conv_w, conv_b, fc_w, fc_b)
    assert out2.shape == (B2, OUTPUT_SIZE)
    assert jnp.allclose(out2, ref2, atol=1e-5, rtol=1e-5)

    print("KERNEL_OK")
</pallas_src>

<mosaic_0001>
module attributes {stable_mosaic.version = 11 : i64} {
  func.func @cnn_kernel(%arg0: i32, %arg1: memref<2xf32, #tpu.memory_space<smem>>, %arg2: memref<1x128xf32, #tpu.memory_space<vmem>>, %arg3: memref<1x128xf32, #tpu.memory_space<vmem>>) attributes {dimension_semantics = [#tpu.dimension_semantics<parallel>], iteration_bounds = array<i64: 1>, scalar_prefetch = 0 : i64, scratch_operands = 0 : i64, tpu.core_type = #tpu.core_type<tc>, window_params = [{transform_indices = @transform_0, window_bounds = array<i64: 2>}, {transform_indices = @transform_1, window_bounds = array<i64: 1, 128>}, {transform_indices = @transform_2, window_bounds = array<i64: 1, 128>}]} {
    %c0 = arith.constant 0 : index
    %c0_0 = arith.constant 0 : index
    %0 = vector.load %arg2[%c0, %c0_0] : memref<1x128xf32, #tpu.memory_space<vmem>>, vector<1x128xf32>
    %c0_1 = arith.constant 0 : index
    %1 = memref.load %arg1[%c0_1] : memref<2xf32, #tpu.memory_space<smem>>
    %2 = vector.broadcast %1 : f32 to vector<1x128xf32>
    %3 = arith.mulf %0, %2 : vector<1x128xf32>
    %c1 = arith.constant 1 : index
    %4 = memref.load %arg1[%c1] : memref<2xf32, #tpu.memory_space<smem>>
    %5 = vector.broadcast %4 : f32 to vector<1x128xf32>
    %6 = arith.addf %3, %5 : vector<1x128xf32>
    %c0_2 = arith.constant 0 : index
    %c0_3 = arith.constant 0 : index
    %7 = vector.load %arg3[%c0_2, %c0_3] : memref<1x128xf32, #tpu.memory_space<vmem>>, vector<1x128xf32>
    tpu.vector_store %arg3[%c0_2, %c0_3], %6 {strides = array<i32>} : memref<1x128xf32, #tpu.memory_space<vmem>>, vector<1x128xf32>,
    return
  }
  func.func @transform_0(%arg0: i32) -> i32 {
    %c0_i32 = arith.constant 0 : i32
    %c0_i32_0 = arith.constant 0 : i32
    return %c0_i32 : i32
  }
  func.func @transform_1(%arg0: i32) -> (i32, i32) {
    %c0_i32 = arith.constant 0 : i32
    %c0_i32_0 = arith.constant 0 : i32
    return %arg0, %c0_i32 : i32, i32
  }
  func.func @transform_2(%arg0: i32) -> (i32, i32) {
    %c0_i32 = arith.constant 0 : i32
    %c0_i32_0 = arith.constant 0 : i32
    return %arg0, %c0_i32 : i32, i32
  }
}

</mosaic_0001>

<llo_original>
// kernel: tpu_custom_call.1
$region0: #{tpu_custom_call.1}
  #allocation0 [shape = 'u32[]', space=smem, size = 0x4, offset = 0x4, fixed_abs, tag = 'smem constant byte address 0x4 - core index']
  #allocation1 [shape = 'u32[144,128]{1,0:T(1,128)}', space=vmem, size = 0x12000, scoped, tag = 'internal scratch']
  %s0 = inlined_call_operand.hbm [shape: f32[2], index: 0, kind: input, shape index: {}]
  %s1 = inlined_call_operand.vmem [shape: f32[1,128], index: 1, kind: input, shape index: {}]
  %s2 = inlined_call_operand.hbm [shape: f32[1,128], index: 2, kind: output, shape index: {}]
  %s3 = sld [smem:[#allocation0]]
  $region22: #{tpu_custom_call.1} parent=0
    _
  %s5 = ssub.s32 1, %s3
  %s6 = scalar_select 0, %s5, %s3
  $region1: #{tpu_custom_call.1} parent=0
    #allocation2 [shape = 'u8[512]{0}', space=smem, size = 0x200, scoped, tag = 'input window, operand 0, single buffered']
    #allocation3 [shape = 's32[1]{0}', space=sflag, size = 0x4, scoped, tag = 'scoped memory for tpu_custom_call.1']
    #allocation4 [shape = 's32[1]{0}', space=sflag, size = 0x4, scoped, tag = 'scoped memory for tpu_custom_call.1']
    #allocation5 [shape = 'u8[512]{0}', space=vmem, size = 0x400, scoped, tag = 'output window, operand 0, single buffered']
    %7 = vsyncpa [#allocation4], 0
    %8 = vsyncpa [#allocation3], 0
    // Predicated region
    $region2: #{tpu_custom_call.1} parent=1 // pred_check
      _
    $region3: #{tpu_custom_call.1} parent=1 // pred_check_branch
      %10 = sbr.rel (0) target = $region5
    $region4: #{tpu_custom_call.1} parent=1 // pred_region
      %s12 = ssub.s32 16, 16
      %13 = vsyncadd [#allocation4], %s12
      %16 = dma.hbm_to_smem %s0, 16, [#allocation2], [#allocation4]
    $region5: #{tpu_custom_call.1} parent=1 // pred_fallthru
      _
    // Predicated region
    $region6: #{tpu_custom_call.1} parent=1 // pred_check
      _
    $region7: #{tpu_custom_call.1} parent=1 // pred_check_branch
      %18 = sbr.rel (0) target = $region9
    $region8: #{tpu_custom_call.1} parent=1 // pred_region
      _
    $region9: #{tpu_custom_call.1} parent=1 // pred_fallthru
      _
    // Predicated region
    $region10: #{tpu_custom_call.1} parent=1 // pred_check
      _
    $region11: #{tpu_custom_call.1} parent=1 // pred_check_branch
      %20 = sbr.rel (0) target = $region13
    $region12: #{tpu_custom_call.1} parent=1 // pred_region
      %21 = dma.done [#allocation4], 16
    $region13: #{tpu_custom_call.1} parent=1 // pred_fallthru
      _
    %22 = sfence
    %v23 = vld [vmem:[%s1] sm:$0x1]
    %s24 = sld [smem:[#allocation2]]
    %v25 = vstv %s24
    %v26 = vmul.f32 %v23, %v25
    %s27 = sld [smem:[#allocation2 + $0x1]]
    %v28 = vstv %s27
    %v29 = vadd.f32 %v26, %v28
    %30 = vst [vmem:[#allocation5] sm:$0x1] %v29
    // Predicated region
    $region14: #{tpu_custom_call.1} parent=1 // pred_check
      _
    $region15: #{tpu_custom_call.1} parent=1 // pred_check_branch
      %32 = sbr.rel (0) target = $region17
    $region16: #{tpu_custom_call.1} parent=1 // pred_region
      %s34 = ssub.s32 16, 16
      %35 = vsyncadd [#allocation3], %s34
      %s37 = sshll.u32 [#allocation5], 4
      %s38 = int_to_ptr.vmem [resolvable:$true] %s37
      %40 = dma.vmem_to_hbm [thread:$0]  %s38, 16, %s2, [#allocation3]
    $region17: #{tpu_custom_call.1} parent=1 // pred_fallthru
      _
    // Predicated region
    $region18: #{tpu_custom_call.1} parent=1 // pred_check
      _
    $region19: #{tpu_custom_call.1} parent=1 // pred_check_branch
      %42 = sbr.rel (0) target = $region21
    $region20: #{tpu_custom_call.1} parent=1 // pred_region
      %43 = dma.done [#allocation3], 16
    $region21: #{tpu_custom_call.1} parent=1 // pred_fallthru
      _
    %44 = vsyncpa [#allocation3], 1
    %45 = vsyncpa [#allocation4], 1

</llo_original>
